<compile_context>
chip_gen: v7x
topology: tpu7x:2x2x1
jax: 0.10.0
libtpu: 0.0.40
codegen_flags: <defaults>
</compile_context>

<pallas_src>
import math
from functools import partial

import jax
import jax.numpy as jnp
from jax.experimental import pallas as pl
from jax.experimental.pallas import tpu as pltpu


def _round_up(x, m):
    return (x + m - 1) // m * m


def _pad_to(arr, target_shape):
    pads = [(0, t - s) for s, t in zip(arr.shape, target_shape)]
    if all(p == (0, 0) for p in pads):
        return arr
    return jnp.pad(arr, pads)


def _pick_tn(inner_p, tn_max):
    """Largest multiple of 128 <= tn_max that divides inner_p (inner_p % 128 == 0)."""
    tn = min(tn_max, inner_p)
    tn = max(128, (tn // 128) * 128)
    while inner_p % tn:
        tn -= 128
    return tn


def _vmem_limit_bytes():
    """Generation-aware scoped-VMEM request with headroom for compiler scratch."""
    cap = None
    get_info = getattr(pltpu, "get_tpu_info", None)
    if get_info is not None:
        try:
            cap = get_info().vmem_capacity_bytes
        except Exception:
            cap = None
    if cap is None:
        cap = 64 * 1024 * 1024  # conservative: v7x per-TensorCore VMEM
    limit = min(cap - 16 * 1024 * 1024, 110 * 1024 * 1024)
    return max(32 * 1024 * 1024, limit)


def _ff_kernel(x_ref, w1_ref, b1_ref, w2_ref, b2_ref, o_ref, acc_ref, *,
               approximate, compute_dtype):
    # Grid: (i over M tiles [parallel], k over inner-dim tiles [arbitrary]).
    # x_ref:  (tm, dim_p)        native dtype (cast to bf16 in-kernel)
    # w1_ref: (dim_p, tn)        bf16   b1_ref: (1, tn)        f32
    # w2_ref: (tn, dim_out_p)    bf16   b2_ref: (1, dim_out_p) f32
    # o_ref:  (tm, dim_out_p)           acc_ref:(tm, dim_out_p) f32 scratch
    k = pl.program_id(1)

    @pl.when(k == 0)
    def _init():
        acc_ref[...] = jnp.zeros_like(acc_ref)

    x = x_ref[...].astype(compute_dtype)           # in-kernel cast (free under MXU)
    # Partial Linear1 for this inner block, f32 accumulation + f32 bias slice.
    h = jnp.dot(x, w1_ref[...], preferred_element_type=jnp.float32) + b1_ref[...]
    if approximate:
        # tanh-approx GELU in f32 -> EUP slot, overlaps with MXU work.
        g = jax.nn.gelu(h, approximate=True)
    else:
        # Exact erf GELU (torch.nn.GELU default), f32.
        g = 0.5 * h * (1.0 + jax.lax.erf(h * (1.0 / math.sqrt(2.0))))
    # Partial Linear2: accumulate this inner block's contribution.
    acc_ref[...] += jnp.dot(g.astype(compute_dtype), w2_ref[...],
                            preferred_element_type=jnp.float32)

    @pl.when(k == pl.num_programs(1) - 1)
    def _finalize():
        o_ref[...] = (acc_ref[...] + b2_ref[...]).astype(o_ref.dtype)


def prepare_ffn_params(w1, b1, w2, b2, *, compute_dtype=jnp.bfloat16):
    """Init-time: pad feature dims to multiples of 128 and cast weights to bf16.

    Zero-padding is numerically exact (padded rows/cols contribute nothing,
    gelu(0) == 0).  Doing this once avoids a per-call pad/cast pass over the
    weights in the data path.
    """
    dim, inner = w1.shape
    dim_out = w2.shape[1]
    dim_p = _round_up(dim, 128)
    inner_p = _round_up(inner, 128)
    dim_out_p = _round_up(dim_out, 128)
    return {
        "w1": _pad_to(w1, (dim_p, inner_p)).astype(compute_dtype),
        "b1": _pad_to(b1.reshape(1, inner), (1, inner_p)).astype(jnp.float32),
        "w2": _pad_to(w2, (inner_p, dim_out_p)).astype(compute_dtype),
        "b2": _pad_to(b2.reshape(1, dim_out), (1, dim_out_p)).astype(jnp.float32),
        "dim": dim, "inner": inner, "dim_out": dim_out,
        "compute_dtype": compute_dtype,
    }


def feed_forward(x, params, *, tm=512, tn=512, approximate_gelu=True):
    """x: (B, S, dim) -> (B, S, dim_out). `params` from prepare_ffn_params()."""
    B, S, dim = x.shape
    assert dim == params["dim"], "x feature dim does not match prepared params"
    compute_dtype = params["compute_dtype"]
    w1_p, b1_p, w2_p, b2_p = params["w1"], params["b1"], params["w2"], params["b2"]
    dim_p, inner_p = w1_p.shape
    dim_out_p = w2_p.shape[1]
    dim_out = params["dim_out"]
    out_dtype = x.dtype
    M = B * S

    # --- M tiling: multiple of 16 (bf16 sublane packing; ideally 256 on v6e/v7x
    # for full MXU passes), rebalanced so the ragged last tile carries <16
    # padded rows rather than up to tm-1 rows of pure padding work.
    tm_cap = max(16, (min(tm, _round_up(M, 16)) // 16) * 16)
    n_m = -(-M // tm_cap)
    tm_eff = _round_up(-(-M // n_m), 16)
    M_pad = n_m * tm_eff

    # --- inner-dim tiling: multiple of 128 dividing inner_p.
    tn_eff = _pick_tn(inner_p, tn)
    n_k = inner_p // tn_eff

    # x stays in its native dtype (cast happens in-kernel); pad only if needed.
    x2 = _pad_to(x.reshape(M, dim), (M_pad, dim_p))

    # Advisory cost estimate for XLA's scheduler.
    w_bytes = int(w1_p.size) * w1_p.dtype.itemsize + int(w2_p.size) * w2_p.dtype.itemsize
    bytes_accessed = (
        M_pad * dim_p * x2.dtype.itemsize                  # x (fetched once per M tile)
        + n_m * w_bytes                                    # weights re-streamed per M tile
        + n_m * (inner_p + dim_out_p) * 4                  # biases (f32)
        + M_pad * dim_out_p * jnp.dtype(out_dtype).itemsize)
    cost = pl.CostEstimate(
        flops=2 * M_pad * (dim_p * inner_p + inner_p * dim_out_p),
        transcendentals=M_pad * inner_p,
        bytes_accessed=int(bytes_accessed))

    out2 = pl.pallas_call(
        partial(_ff_kernel, approximate=approximate_gelu, compute_dtype=compute_dtype),
        out_shape=jax.ShapeDtypeStruct((M_pad, dim_out_p), out_dtype),
        grid_spec=pltpu.PrefetchScalarGridSpec(
            num_scalar_prefetch=0,
            grid=(n_m, n_k),
            in_specs=[
                pl.BlockSpec((tm_eff, dim_p), lambda i, k: (i, 0)),      # x (reused across k)
                pl.BlockSpec((dim_p, tn_eff), lambda i, k: (0, k)),      # w1 inner block (streamed)
                pl.BlockSpec((1, tn_eff), lambda i, k: (0, k)),          # b1 inner block
                pl.BlockSpec((tn_eff, dim_out_p), lambda i, k: (k, 0)),  # w2 inner block (streamed)
                pl.BlockSpec((1, dim_out_p), lambda i, k: (0, 0)),       # b2 (tiny, invariant)
            ],
            out_specs=pl.BlockSpec((tm_eff, dim_out_p), lambda i, k: (i, 0)),
            scratch_shapes=[pltpu.VMEM((tm_eff, dim_out_p), jnp.float32)],
        ),
        compiler_params=pltpu.CompilerParams(
            dimension_semantics=("parallel", "arbitrary"),
            vmem_limit_bytes=_vmem_limit_bytes()),
        cost_estimate=cost,
    )(x2, w1_p, b1_p, w2_p, b2_p)

    return out2[:M, :dim_out].reshape(B, S, dim_out)


def _init_linear(key, fan_in, fan_out, dtype=jnp.float32):
    # Deterministic init mimicking torch.nn.Linear (uniform +/- 1/sqrt(fan_in)).
    kw, kb = jax.random.split(key)
    bound = 1.0 / math.sqrt(fan_in)
    w = jax.random.uniform(kw, (fan_in, fan_out), dtype, -bound, bound)
    b = jax.random.uniform(kb, (fan_out,), dtype, -bound, bound)
    return w, b


def _reference(x, w1, b1, w2, b2, *, compute_dtype=jnp.float32, approximate=False):
    xc = x.astype(compute_dtype)
    h = jnp.einsum("bsd,di->bsi", xc, w1.astype(compute_dtype),
                   preferred_element_type=jnp.float32) + b1
    if approximate:
        g = jax.nn.gelu(h, approximate=True)
    else:
        g = 0.5 * h * (1.0 + jax.lax.erf(h / jnp.sqrt(2.0)))
    y = jnp.einsum("bsi,io->bso", g.astype(compute_dtype), w2.astype(compute_dtype),
                   preferred_element_type=jnp.float32) + b2
    return y.astype(x.dtype)


if __name__ == "__main__":
    # Small shapes consistent with FeedForward(dim=32, mult=4):
    B, S, dim = 2, 8, 32
    mult = 4
    inner = dim * mult      # 128
    dim_out = dim           # default(dim_out, dim)

    key = jax.random.PRNGKey(0)
    kx, k1, k2 = jax.random.split(key, 3)
    x = jax.random.normal(kx, (B, S, dim), jnp.float32)
    w1, b1 = _init_linear(k1, dim, inner)
    w2, b2 = _init_linear(k2, inner, dim_out)

    params = prepare_ffn_params(w1, b1, w2, b2)      # init-time pad + cast, once
    y = feed_forward(x, params)
    y = jax.block_until_ready(y)
    assert y.shape == (B, S, dim_out)

    # Check 1: matched-precision reference (bf16 MXU inputs + tanh GELU, f32 acc).
    y_match = _reference(x, w1, b1, w2, b2,
                         compute_dtype=jnp.bfloat16, approximate=True)
    assert jnp.allclose(y, y_match, atol=1e-2, rtol=1e-2), \
        "mismatch vs matched-precision reference"

    # Check 2: full-precision torch-semantics reference (f32, exact erf GELU);
    # looser tolerance accounts for the deliberate bf16 + tanh-GELU perf choices
    # (callers needing torch bit-parity: approximate_gelu=False, compute_dtype=f32).
    y_ref = _reference(x, w1, b1, w2, b2,
                       compute_dtype=jnp.float32, approximate=False)
    assert jnp.allclose(y, y_ref, atol=5e-2, rtol=5e-2), \
        "mismatch vs f32 erf-GELU reference"

    # TODO(synk): glu=True (GEGLU) branch and dropout>0 are not exercised by the
    # default FeedForward config; only the Linear->GELU->Linear path is fused here.
    print("KERNEL_OK")
</pallas_src>

<mosaic_0001>
module attributes {stable_mosaic.version = 11 : i64} {
  func.func @_ff_kernel(%arg0: i32, %arg1: i32, %arg2: memref<16x128xf32, #tpu.memory_space<vmem>>, %arg3: memref<128x128xbf16, #tpu.memory_space<vmem>>, %arg4: memref<1x128xf32, #tpu.memory_space<vmem>>, %arg5: memref<128x128xbf16, #tpu.memory_space<vmem>>, %arg6: memref<1x128xf32, #tpu.memory_space<vmem>>, %arg7: memref<16x128xf32, #tpu.memory_space<vmem>>, %arg8: memref<16x128xf32, #tpu.memory_space<vmem>>) attributes {dimension_semantics = [#tpu.dimension_semantics<parallel>, #tpu.dimension_semantics<arbitrary>], iteration_bounds = array<i64: 1, 1>, scalar_prefetch = 0 : i64, scratch_operands = 1 : i64, tpu.core_type = #tpu.core_type<tc>, window_params = [{transform_indices = @transform_0, window_bounds = array<i64: 16, 128>}, {transform_indices = @transform_1, window_bounds = array<i64: 128, 128>}, {transform_indices = @transform_2, window_bounds = array<i64: 1, 128>}, {transform_indices = @transform_3, window_bounds = array<i64: 128, 128>}, {pipeline_mode = #tpu.pipeline_mode<synchronous>, transform_indices = @transform_4, window_bounds = array<i64: 1, 128>}, {transform_indices = @transform_5, window_bounds = array<i64: 16, 128>}]} {
    %c0_i32 = arith.constant 0 : i32
    %0 = arith.cmpi eq, %arg1, %c0_i32 : i32
    %1 = arith.extui %0 : i1 to i32
    %c0_i32_0 = arith.constant 0 : i32
    %2 = arith.cmpi ne, %1, %c0_i32_0 : i32
    scf.if %2 {
      %cst_19 = arith.constant 0.000000e+00 : f32
      %32 = vector.broadcast %cst_19 : f32 to vector<16x128xf32>
      %c0_20 = arith.constant 0 : index
      %c0_21 = arith.constant 0 : index
      %33 = vector.load %arg8[%c0_20, %c0_21] : memref<16x128xf32, #tpu.memory_space<vmem>>, vector<16x128xf32>
      tpu.vector_store %arg8[%c0_20, %c0_21], %32 {strides = array<i32>} : memref<16x128xf32, #tpu.memory_space<vmem>>, vector<16x128xf32>,
    } else {
    }
    %c0 = arith.constant 0 : index
    %c0_1 = arith.constant 0 : index
    %3 = vector.load %arg2[%c0, %c0_1] : memref<16x128xf32, #tpu.memory_space<vmem>>, vector<16x128xf32>
    %4 = arith.truncf %3 : vector<16x128xf32> to vector<16x128xbf16>
    %c0_2 = arith.constant 0 : index
    %c0_3 = arith.constant 0 : index
    %5 = vector.load %arg3[%c0_2, %c0_3] : memref<128x128xbf16, #tpu.memory_space<vmem>>, vector<128x128xbf16>
    %cst = arith.constant dense<0.000000e+00> : vector<16x128xf32>
    %6 = tpu.matmul %4, %5, %cst {dimension_numbers = #tpu.dot_dimension_numbers<[1], [0], [0], [1], [0, 0, 1, 1], [], []>} : vector<16x128xbf16>, vector<128x128xbf16>, vector<16x128xf32> -> vector<16x128xf32>
    %c0_4 = arith.constant 0 : index
    %c0_5 = arith.constant 0 : index
    %7 = vector.load %arg4[%c0_4, %c0_5] : memref<1x128xf32, #tpu.memory_space<vmem>>, vector<1x128xf32>
    %8 = vector.broadcast %7 : vector<1x128xf32> to vector<16x128xf32>
    %9 = arith.addf %6, %8 : vector<16x128xf32>
    %10 = arith.mulf %9, %9 : vector<16x128xf32>
    %11 = arith.mulf %9, %10 : vector<16x128xf32>
    %cst_6 = arith.constant 4.471500e-02 : f32
    %12 = vector.broadcast %cst_6 : f32 to vector<16x128xf32>
    %13 = arith.mulf %12, %11 : vector<16x128xf32>
    %14 = arith.addf %9, %13 : vector<16x128xf32>
    %cst_7 = arith.constant 0.797884583 : f32
    %15 = vector.broadcast %cst_7 : f32 to vector<16x128xf32>
    %16 = arith.mulf %15, %14 : vector<16x128xf32>
    %17 = math.tanh %16 : vector<16x128xf32>
    %cst_8 = arith.constant 1.000000e+00 : f32
    %18 = vector.broadcast %cst_8 : f32 to vector<16x128xf32>
    %19 = arith.addf %18, %17 : vector<16x128xf32>
    %cst_9 = arith.constant 5.000000e-01 : f32
    %20 = vector.broadcast %cst_9 : f32 to vector<16x128xf32>
    %21 = arith.mulf %20, %19 : vector<16x128xf32>
    %22 = arith.mulf %9, %21 : vector<16x128xf32>
    %c0_10 = arith.constant 0 : index
    %c0_11 = arith.constant 0 : index
    %23 = vector.load %arg8[%c0_10, %c0_11] : memref<16x128xf32, #tpu.memory_space<vmem>>, vector<16x128xf32>
    %24 = arith.truncf %22 : vector<16x128xf32> to vector<16x128xbf16>
    %c0_12 = arith.constant 0 : index
    %c0_13 = arith.constant 0 : index
    %25 = vector.load %arg5[%c0_12, %c0_13] : memref<128x128xbf16, #tpu.memory_space<vmem>>, vector<128x128xbf16>
    %cst_14 = arith.constant dense<0.000000e+00> : vector<16x128xf32>
    %26 = tpu.matmul %24, %25, %cst_14 {dimension_numbers = #tpu.dot_dimension_numbers<[1], [0], [0], [1], [0, 0, 1, 1], [], []>} : vector<16x128xbf16>, vector<128x128xbf16>, vector<16x128xf32> -> vector<16x128xf32>
    %27 = arith.addf %23, %26 : vector<16x128xf32>
    %c0_15 = arith.constant 0 : index
    %c0_16 = arith.constant 0 : index
    %28 = vector.load %arg8[%c0_15, %c0_16] : memref<16x128xf32, #tpu.memory_space<vmem>>, vector<16x128xf32>
    tpu.vector_store %arg8[%c0_15, %c0_16], %27 {strides = array<i32>} : memref<16x128xf32, #tpu.memory_space<vmem>>, vector<16x128xf32>,
    %c0_i32_17 = arith.constant 0 : i32
    %29 = arith.cmpi eq, %arg1, %c0_i32_17 : i32
    %30 = arith.extui %29 : i1 to i32
    %c0_i32_18 = arith.constant 0 : i32
    %31 = arith.cmpi ne, %30, %c0_i32_18 : i32
    scf.if %31 {
      %c0_19 = arith.constant 0 : index
      %c0_20 = arith.constant 0 : index
      %32 = vector.load %arg8[%c0_19, %c0_20] : memref<16x128xf32, #tpu.memory_space<vmem>>, vector<16x128xf32>
      %c0_21 = arith.constant 0 : index
      %c0_22 = arith.constant 0 : index
      %33 = vector.load %arg6[%c0_21, %c0_22] : memref<1x128xf32, #tpu.memory_space<vmem>>, vector<1x128xf32>
      %34 = vector.broadcast %33 : vector<1x128xf32> to vector<16x128xf32>
      %35 = arith.addf %32, %34 : vector<16x128xf32>
      %c0_23 = arith.constant 0 : index
      %c0_24 = arith.constant 0 : index
      %36 = vector.load %arg7[%c0_23, %c0_24] : memref<16x128xf32, #tpu.memory_space<vmem>>, vector<16x128xf32>
      tpu.vector_store %arg7[%c0_23, %c0_24], %35 {strides = array<i32>} : memref<16x128xf32, #tpu.memory_space<vmem>>, vector<16x128xf32>,
    } else {
    }
    return
  }
  func.func @transform_0(%arg0: i32, %arg1: i32) -> (i32, i32) {
    %c0_i32 = arith.constant 0 : i32
    %c0_i32_0 = arith.constant 0 : i32
    return %arg0, %c0_i32 : i32, i32
  }
  func.func @transform_1(%arg0: i32, %arg1: i32) -> (i32, i32) {
    %c0_i32 = arith.constant 0 : i32
    %c0_i32_0 = arith.constant 0 : i32
    return %c0_i32, %arg1 : i32, i32
  }
  func.func @transform_2(%arg0: i32, %arg1: i32) -> (i32, i32) {
    %c0_i32 = arith.constant 0 : i32
    %c0_i32_0 = arith.constant 0 : i32
    return %c0_i32, %arg1 : i32, i32
  }
  func.func @transform_3(%arg0: i32, %arg1: i32) -> (i32, i32) {
    %c0_i32 = arith.constant 0 : i32
    %c0_i32_0 = arith.constant 0 : i32
    return %arg1, %c0_i32 : i32, i32
  }
  func.func @transform_4(%arg0: i32, %arg1: i32) -> (i32, i32) {
    %c0_i32 = arith.constant 0 : i32
    %c0_i32_0 = arith.constant 0 : i32
    %c0_i32_1 = arith.constant 0 : i32
    return %c0_i32, %c0_i32_0 : i32, i32
  }
  func.func @transform_5(%arg0: i32, %arg1: i32) -> (i32, i32) {
    %c0_i32 = arith.constant 0 : i32
    %c0_i32_0 = arith.constant 0 : i32
    return %arg0, %c0_i32 : i32, i32
  }
}

</mosaic_0001>

<llo_original>
// kernel: tpu_custom_call.1
$region0: #{tpu_custom_call.1}
  #allocation0 [shape = 'u32[]', space=smem, size = 0x4, offset = 0x4, fixed_abs, tag = 'smem constant byte address 0x4 - core index']
  #allocation1 [shape = 'u32[144,128]{1,0:T(1,128)}', space=vmem, size = 0x12000, scoped, tag = 'internal scratch']
  #allocation2 [shape = 'f32[16,128]{1,0:T(8,128)}', space=vmem, size = 0x2000, scoped, tag = 'scratch operand']
  %s0 = inlined_call_operand.hbm [shape: f32[16,128], index: 0, kind: input, shape index: {}]
  %s1 = inlined_call_operand.hbm [shape: bf16[128,128], index: 1, kind: input, shape index: {}]
  %s2 = inlined_call_operand.vmem [shape: f32[1,128], index: 2, kind: input, shape index: {}]
  %s3 = inlined_call_operand.hbm [shape: bf16[128,128], index: 3, kind: input, shape index: {}]
  %s4 = inlined_call_operand.vmem [shape: f32[1,128], index: 4, kind: input, shape index: {}]
  %s5 = inlined_call_operand.hbm [shape: f32[16,128], index: 5, kind: output, shape index: {}]
  %s6 = sld [smem:[#allocation0]]
  $region50: #{tpu_custom_call.1} parent=0
    _
  %s8 = ssub.s32 1, %s6
  %s9 = scalar_select 0, %s8, %s6
  $region1: #{tpu_custom_call.1} parent=0
    #allocation3 [shape = 'u8[8192]{0}', space=vmem, size = 0x2000, scoped, tag = 'input window, operand 0, single buffered']
    #allocation4 [shape = 's32[1]{0}', space=sflag, size = 0x4, scoped, tag = 'scoped memory for tpu_custom_call.1']
    #allocation5 [shape = 's32[1]{0}', space=sflag, size = 0x4, scoped, tag = 'scoped memory for tpu_custom_call.1']
    #allocation6 [shape = 'u8[32768]{0}', space=vmem, size = 0x8000, scoped, tag = 'input window, operand 1, single buffered']
    #allocation7 [shape = 's32[1]{0}', space=sflag, size = 0x4, scoped, tag = 'scoped memory for tpu_custom_call.1']
    #allocation8 [shape = 'u8[32768]{0}', space=vmem, size = 0x8000, scoped, tag = 'input window, operand 3, single buffered']
    #allocation9 [shape = 'u8[8192]{0}', space=vmem, size = 0x2000, scoped, tag = 'output window, operand 0, single buffered']
    %10 = vsyncpa [#allocation4], 0
    %11 = vsyncpa [#allocation7], 0
    %12 = vsyncpa [#allocation5], 0
    // Predicated region
    $region2: #{tpu_custom_call.1} parent=1 // pred_check
      _
    $region3: #{tpu_custom_call.1} parent=1 // pred_check_branch
      %14 = sbr.rel (0) target = $region5
    $region4: #{tpu_custom_call.1} parent=1 // pred_region
      %s16 = ssub.s32 256, 256
      %17 = vsyncadd [#allocation4], %s16
      %s18 = sshll.u32 [#allocation3], 4
      %s19 = int_to_ptr.vmem [resolvable:$true] %s18
      %24 = dma.hbm_to_vmem [thread:$0]  %s0, 256, %s19, [#allocation4], 128, 128, 8
    $region5: #{tpu_custom_call.1} parent=1 // pred_fallthru
      _
    // Predicated region
    $region6: #{tpu_custom_call.1} parent=1 // pred_check
      _
    $region7: #{tpu_custom_call.1} parent=1 // pred_check_branch
      %26 = sbr.rel (0) target = $region9
    $region8: #{tpu_custom_call.1} parent=1 // pred_region
      %s28 = ssub.s32 1024, 1024
      %29 = vsyncadd [#allocation7], %s28
      %s30 = sshll.u32 [#allocation6], 4
      %s31 = int_to_ptr.vmem [resolvable:$true] %s30
      %36 = dma.hbm_to_vmem [thread:$0]  %s1, 1024, %s31, [#allocation7], 64, 64, 4
    $region9: #{tpu_custom_call.1} parent=1 // pred_fallthru
      _
    // Predicated region
    $region10: #{tpu_custom_call.1} parent=1 // pred_check
      _
    $region11: #{tpu_custom_call.1} parent=1 // pred_check_branch
      %38 = sbr.rel (0) target = $region13
    $region12: #{tpu_custom_call.1} parent=1 // pred_region
      _
    $region13: #{tpu_custom_call.1} parent=1 // pred_fallthru
      _
    // Predicated region
    $region14: #{tpu_custom_call.1} parent=1 // pred_check
      _
    $region15: #{tpu_custom_call.1} parent=1 // pred_check_branch
      %40 = sbr.rel (0) target = $region17
    $region16: #{tpu_custom_call.1} parent=1 // pred_region
      %s42 = ssub.s32 1024, 1024
      %43 = vsyncadd [#allocation7], %s42
      %s44 = sshll.u32 [#allocation8], 4
      %s45 = int_to_ptr.vmem [resolvable:$true] %s44
      %50 = dma.hbm_to_vmem [thread:$0]  %s3, 1024, %s45, [#allocation7], 64, 64, 4
    $region17: #{tpu_custom_call.1} parent=1 // pred_fallthru
      _
    // Predicated region
    $region18: #{tpu_custom_call.1} parent=1 // pred_check
      _
    $region19: #{tpu_custom_call.1} parent=1 // pred_check_branch
      %52 = sbr.rel (0) target = $region21
    $region20: #{tpu_custom_call.1} parent=1 // pred_region
      _
    $region21: #{tpu_custom_call.1} parent=1 // pred_fallthru
      _
    // Predicated region
    $region22: #{tpu_custom_call.1} parent=1 // pred_check
      _
    $region23: #{tpu_custom_call.1} parent=1 // pred_check_branch
      %54 = sbr.rel (0) target = $region25
    $region24: #{tpu_custom_call.1} parent=1 // pred_region
      %55 = dma.done [#allocation4], 256
    $region25: #{tpu_custom_call.1} parent=1 // pred_fallthru
      _
    // Predicated region
    $region26: #{tpu_custom_call.1} parent=1 // pred_check
      _
    $region27: #{tpu_custom_call.1} parent=1 // pred_check_branch
      %57 = sbr.rel (0) target = $region29
    $region28: #{tpu_custom_call.1} parent=1 // pred_region
      %58 = dma.done [#allocation7], 1024
    $region29: #{tpu_custom_call.1} parent=1 // pred_fallthru
      _
    // Predicated region
    $region30: #{tpu_custom_call.1} parent=1 // pred_check
      _
    $region31: #{tpu_custom_call.1} parent=1 // pred_check_branch
      %60 = sbr.rel (0) target = $region33
    $region32: #{tpu_custom_call.1} parent=1 // pred_region
      %61 = dma.done [#allocation7], 1024
    $region33: #{tpu_custom_call.1} parent=1 // pred_fallthru
      _
    %p63 = scmp.eq.s32.totalorder 0, 0
    // Predicated region
    $region34: #{tpu_custom_call.1} parent=1 // pred_check
      %p64 = pneg %p63
    $region35: #{tpu_custom_call.1} parent=1 // pred_check_branch
      %66 = sbr.rel (%p64) target = $region37
    $region36: #{tpu_custom_call.1} parent=1 // pred_region
      %67 = vst [vmem:[#allocation2] sm:$0xff] 0.0
      %68 = vst [vmem:[#allocation2 + $0x8] sm:$0xff] 0.0
    $region37: #{tpu_custom_call.1} parent=1 // pred_fallthru
      _
    %v69 = vld [vmem:[#allocation3] sm:$0xff]
    %v70 = vld [vmem:[#allocation3 + $0x8] sm:$0xff]
    %v71 = vpack.c.bf16 %v70, %v69
    %v72 = vld [vmem:[#allocation6] sm:$0xf]
    %v73 = vld [vmem:[#allocation6 + $0x4] sm:$0xf]
    %v74 = vld [vmem:[#allocation6 + $0x8] sm:$0xf]
    %v75 = vld [vmem:[#allocation6 + $0xc] sm:$0xf]
    %v76 = vld [vmem:[#allocation6 + $0x10] sm:$0xf]
    %v77 = vld [vmem:[#allocation6 + $0x14] sm:$0xf]
    %v78 = vld [vmem:[#allocation6 + $0x18] sm:$0xf]
    %v79 = vld [vmem:[#allocation6 + $0x1c] sm:$0xf]
    %v80 = vld [vmem:[#allocation6 + $0x20] sm:$0xf]
    %v81 = vld [vmem:[#allocation6 + $0x24] sm:$0xf]
    %v82 = vld [vmem:[#allocation6 + $0x28] sm:$0xf]
    %v83 = vld [vmem:[#allocation6 + $0x2c] sm:$0xf]
    %v84 = vld [vmem:[#allocation6 + $0x30] sm:$0xf]
    %v85 = vld [vmem:[#allocation6 + $0x34] sm:$0xf]
    %v86 = vld [vmem:[#allocation6 + $0x38] sm:$0xf]
    %v87 = vld [vmem:[#allocation6 + $0x3c] sm:$0xf]
    %v88 = vld [vmem:[%s2] sm:$0x1]
    %v90 = vlaneseq
    %v91 = vshrl.u32 %v90, 7
    %v92 = vsub.s32 0, %v91
    %v93 = vrot.slane %v88, %v92
    %v111 = vunpack.c.l.b16 %v72
    %v112 = vunpack.c.l.b16 %v73
    %v113 = vunpack.c.l.b16 %v74
    %v114 = vunpack.c.l.b16 %v75
    %v115 = vunpack.c.l.b16 %v76
    %v116 = vunpack.c.l.b16 %v77
    %v117 = vunpack.c.l.b16 %v78
    %v118 = vunpack.c.l.b16 %v79
    %v119 = vunpack.c.l.b16 %v80
    %v120 = vunpack.c.l.b16 %v81
    %v121 = vunpack.c.l.b16 %v82
    %v122 = vunpack.c.l.b16 %v83
    %v123 = vunpack.c.l.b16 %v84
    %v124 = vunpack.c.l.b16 %v85
    %v125 = vunpack.c.l.b16 %v86
    %v126 = vunpack.c.l.b16 %v87
    %v127 = vpack.c.b16 %v112, %v111
    %v128 = vpack.c.b16 %v114, %v113
    %v129 = vpack.c.b16 %v116, %v115
    %v130 = vpack.c.b16 %v118, %v117
    %v131 = vpack.c.b16 %v120, %v119
    %v132 = vpack.c.b16 %v122, %v121
    %v133 = vpack.c.b16 %v124, %v123
    %v134 = vpack.c.b16 %v126, %v125
    %143 = vmatprep.subr.bf16.mxu0 0
    %144 = vmatpush1.bf16.msra.mxu0 %v127
    %145 = vmatprep.subr.bf16.mxu0 0
    %146 = vmatpush1.bf16.msra.mxu0 %v128
    %147 = vmatprep.subr.bf16.mxu0 0
    %148 = vmatpush1.bf16.msra.mxu0 %v129
    %149 = vmatprep.subr.bf16.mxu0 0
    %150 = vmatpush1.bf16.msra.mxu0 %v130
    %151 = vmatprep.subr.bf16.mxu0 0
    %152 = vmatpush1.bf16.msra.mxu0 %v131
    %153 = vmatprep.subr.bf16.mxu0 0
    %154 = vmatpush1.bf16.msra.mxu0 %v132
    %155 = vmatprep.subr.bf16.mxu0 0
    %156 = vmatpush1.bf16.msra.mxu0 %v133
    %157 = vmatprep.subr.bf16.mxu0 0
    %158 = vmatpush1.bf16.msra.mxu0 %v134
    %159 = vmatprep.subr.bf16.mxu0 0
    %160 = vmatpush1.bf16.msra.mxu0 0
    %161 = vmatprep.subr.bf16.mxu0 0
    %162 = vmatpush1.bf16.msra.mxu0 0
    %163 = vmatprep.subr.bf16.mxu0 0
    %164 = vmatpush1.bf16.msra.mxu0 0
    %165 = vmatprep.subr.bf16.mxu0 0
    %166 = vmatpush1.bf16.msra.mxu0 0
    %167 = vmatprep.subr.bf16.mxu0 0
    %168 = vmatpush1.bf16.msra.mxu0 0
    %169 = vmatprep.subr.bf16.mxu0 0
    %170 = vmatpush1.bf16.msra.mxu0 0
    %171 = vmatprep.subr.bf16.mxu0 0
    %172 = vmatpush1.bf16.msra.mxu0 0
    %173 = vmatprep.subr.bf16.mxu0 0
    %174 = vmatpush1.bf16.msra.mxu0 0
    %175 = vmatprep.mubr.bf16.mxu0 0
    %176 = vmatmul.mubr.bf16.gmra.mrb[0].mxu0 %v71
    %v177 = vpop.f32.mrb[0].mxu0
    %v178 = vadd.f32 %v93, %v177
    %v179 = vpop.f32.mrb[0].mxu0
    %v180 = vpop.f32.mrb[0].mxu0
    %v181 = vadd.f32 %v93, %v180
    %v182 = vpop.f32.mrb[0].mxu0
    %183 = vdwg.mxu0
    %v184 = vmul.f32 %v178, %v178
    %v185 = vmul.f32 %v181, %v181
    %v186 = vmul.f32 %v178, %v184
    %v187 = vmul.f32 %v181, %v185
    %v188 = vmul.f32 %v186, 0.044715
    %v189 = vmul.f32 %v187, 0.044715
    %v190 = vadd.f32 %v178, %v188
    %v191 = vadd.f32 %v181, %v189
    %v192 = vmul.f32 %v190, 0.7978846
    %v193 = vmul.f32 %v191, 0.7978846
    %v194 = vtanh.pop %v192
    %v195 = vtanh.pop %v193
    %v196 = vadd.f32 %v194, 1.0
    %v197 = vadd.f32 %v195, 1.0
    %v198 = vmul.f32 %v196, 0.5
    %v199 = vmul.f32 %v197, 0.5
    %v200 = vmul.f32 %v178, %v198
    %v201 = vmul.f32 %v181, %v199
    %v202 = vld [vmem:[#allocation2] sm:$0xff]
    %v203 = vld [vmem:[#allocation2 + $0x8] sm:$0xff]
    %v204 = vpack.c.bf16 %v201, %v200
    %v205 = vld [vmem:[#allocation8] sm:$0xf]
    %v206 = vld [vmem:[#allocation8 + $0x4] sm:$0xf]
    %v207 = vld [vmem:[#allocation8 + $0x8] sm:$0xf]
    %v208 = vld [vmem:[#allocation8 + $0xc] sm:$0xf]
    %v209 = vld [vmem:[#allocation8 + $0x10] sm:$0xf]
    %v210 = vld [vmem:[#allocation8 + $0x14] sm:$0xf]
    %v211 = vld [vmem:[#allocation8 + $0x18] sm:$0xf]
    %v212 = vld [vmem:[#allocation8 + $0x1c] sm:$0xf]
    %v213 = vld [vmem:[#allocation8 + $0x20] sm:$0xf]
    %v214 = vld [vmem:[#allocation8 + $0x24] sm:$0xf]
    %v215 = vld [vmem:[#allocation8 + $0x28] sm:$0xf]
    %v216 = vld [vmem:[#allocation8 + $0x2c] sm:$0xf]
    %v217 = vld [vmem:[#allocation8 + $0x30] sm:$0xf]
    %v218 = vld [vmem:[#allocation8 + $0x34] sm:$0xf]
    %v219 = vld [vmem:[#allocation8 + $0x38] sm:$0xf]
    %v220 = vld [vmem:[#allocation8 + $0x3c] sm:$0xf]
    %v237 = vunpack.c.l.b16 %v205
    %v238 = vunpack.c.l.b16 %v206
    %v239 = vunpack.c.l.b16 %v207
    %v240 = vunpack.c.l.b16 %v208
    %v241 = vunpack.c.l.b16 %v209
    %v242 = vunpack.c.l.b16 %v210
    %v243 = vunpack.c.l.b16 %v211
    %v244 = vunpack.c.l.b16 %v212
    %v245 = vunpack.c.l.b16 %v213
    %v246 = vunpack.c.l.b16 %v214
    %v247 = vunpack.c.l.b16 %v215
    %v248 = vunpack.c.l.b16 %v216
    %v249 = vunpack.c.l.b16 %v217
    %v250 = vunpack.c.l.b16 %v218
    %v251 = vunpack.c.l.b16 %v219
    %v252 = vunpack.c.l.b16 %v220
    %v253 = vpack.c.b16 %v238, %v237
    %v254 = vpack.c.b16 %v240, %v239
    %v255 = vpack.c.b16 %v242, %v241
    %v256 = vpack.c.b16 %v244, %v243
    %v257 = vpack.c.b16 %v246, %v245
    %v258 = vpack.c.b16 %v248, %v247
    %v259 = vpack.c.b16 %v250, %v249
    %v260 = vpack.c.b16 %v252, %v251
    %269 = vmatprep.subr.bf16.mxu0 0
    %270 = vmatpush1.bf16.msra.mxu0 %v253
    %271 = vmatprep.subr.bf16.mxu0 0
    %272 = vmatpush1.bf16.msra.mxu0 %v254
    %273 = vmatprep.subr.bf16.mxu0 0
    %274 = vmatpush1.bf16.msra.mxu0 %v255
    %275 = vmatprep.subr.bf16.mxu0 0
    %276 = vmatpush1.bf16.msra.mxu0 %v256
    %277 = vmatprep.subr.bf16.mxu0 0
    %278 = vmatpush1.bf16.msra.mxu0 %v257
    %279 = vmatprep.subr.bf16.mxu0 0
    %280 = vmatpush1.bf16.msra.mxu0 %v258
    %281 = vmatprep.subr.bf16.mxu0 0
    %282 = vmatpush1.bf16.msra.mxu0 %v259
    %283 = vmatprep.subr.bf16.mxu0 0
    %284 = vmatpush1.bf16.msra.mxu0 %v260
    %285 = vmatprep.subr.bf16.mxu0 0
    %286 = vmatpush1.bf16.msra.mxu0 0
    %287 = vmatprep.subr.bf16.mxu0 0
    %288 = vmatpush1.bf16.msra.mxu0 0
    %289 = vmatprep.subr.bf16.mxu0 0
    %290 = vmatpush1.bf16.msra.mxu0 0
    %291 = vmatprep.subr.bf16.mxu0 0
    %292 = vmatpush1.bf16.msra.mxu0 0
    %293 = vmatprep.subr.bf16.mxu0 0
    %294 = vmatpush1.bf16.msra.mxu0 0
    %295 = vmatprep.subr.bf16.mxu0 0
    %296 = vmatpush1.bf16.msra.mxu0 0
    %297 = vmatprep.subr.bf16.mxu0 0
    %298 = vmatpush1.bf16.msra.mxu0 0
    %299 = vmatprep.subr.bf16.mxu0 0
    %300 = vmatpush1.bf16.msra.mxu0 0
    %301 = vmatprep.mubr.bf16.mxu0 0
    %302 = vmatmul.mubr.bf16.gmra.mrb[0].mxu0 %v204
    %v303 = vpop.f32.mrb[0].mxu0
    %v304 = vadd.f32 0.0, %v303
    %v305 = vpop.f32.mrb[0].mxu0
    %v306 = vpop.f32.mrb[0].mxu0
    %v307 = vadd.f32 0.0, %v306
    %v308 = vpop.f32.mrb[0].mxu0
    %309 = vdwg.mxu0
    %v310 = vadd.f32 %v202, %v304
    %v311 = vadd.f32 %v203, %v307
    %312 = vst [vmem:[#allocation2] sm:$0xff] %v310
    %313 = vst [vmem:[#allocation2 + $0x8] sm:$0xff] %v311
    // Predicated region
    $region38: #{tpu_custom_call.1} parent=1 // pred_check
      %p314 = pneg %p63
    $region39: #{tpu_custom_call.1} parent=1 // pred_check_branch
      %316 = sbr.rel (%p314) target = $region41
    $region40: #{tpu_custom_call.1} parent=1 // pred_region
      %v317 = vld [vmem:[#allocation2] sm:$0xff]
      %v318 = vld [vmem:[#allocation2 + $0x8] sm:$0xff]
      %v319 = vld [vmem:[%s4] sm:$0x1]
      %v321 = vlaneseq
      %v322 = vshrl.u32 %v321, 7
      %v323 = vsub.s32 0, %v322
      %v324 = vrot.slane %v319, %v323
      %v326 = vadd.f32 %v317, %v324
      %v327 = vadd.f32 %v318, %v324
      %328 = vst [vmem:[#allocation9] sm:$0xff] %v326
      %329 = vst [vmem:[#allocation9 + $0x8] sm:$0xff] %v327
    $region41: #{tpu_custom_call.1} parent=1 // pred_fallthru
      _
    // Predicated region
    $region42: #{tpu_custom_call.1} parent=1 // pred_check
      _
    $region43: #{tpu_custom_call.1} parent=1 // pred_check_branch
      %331 = sbr.rel (0) target = $region45
    $region44: #{tpu_custom_call.1} parent=1 // pred_region
      %s333 = ssub.s32 256, 256
      %334 = vsyncadd [#allocation5], %s333
      %s335 = sshll.u32 [#allocation9], 4
      %s336 = int_to_ptr.vmem [resolvable:$true] %s335
      %341 = dma.vmem_to_hbm [thread:$0]  %s336, 256, %s5, [#allocation5], 128, 128, 8
    $region45: #{tpu_custom_call.1} parent=1 // pred_fallthru
      _
    // Predicated region
    $region46: #{tpu_custom_call.1} parent=1 // pred_check
      _
    $region47: #{tpu_custom_call.1} parent=1 // pred_check_branch
      %343 = sbr.rel (0) target = $region49
    $region48: #{tpu_custom_call.1} parent=1 // pred_region
      %344 = dma.done [#allocation5], 256
    $region49: #{tpu_custom_call.1} parent=1 // pred_fallthru
      _
    %345 = vsyncpa [#allocation4], 1
    %346 = vsyncpa [#allocation7], 1
    %347 = vsyncpa [#allocation5], 1

</llo_original>
